<compile_context>
chip_gen: v7x
topology: tpu7x:2x2x1
jax: 0.10.0
libtpu: 0.0.40
codegen_flags: <defaults>
</compile_context>

<pallas_src>
import jax
import jax.numpy as jnp
from jax.experimental import pallas as pl
from jax.experimental.pallas import tpu as pltpu


def _divisors(n):
    return [d for d in range(1, n + 1) if n % d == 0]


def _select_tiles(num_channels, num_segments, hidden_dim, itemsize,
                  target_block_bytes=2 << 20):
    """Pick (channels-per-block, segments-per-block) targeting ~2 MiB output blocks."""
    seg_bytes = hidden_dim * itemsize
    chan_bytes = num_segments * seg_bytes          # one full channel slab
    if chan_bytes <= target_block_bytes:
        ts = num_segments
        fits = [d for d in _divisors(num_channels)
                if d * chan_bytes <= target_block_bytes]
        tc = max(fits) if fits else 1
        # Keep the (parallel) channel grid axis at >= 2 steps when possible so v7x's
        # two TensorCores are both used (harmless on single-TC v5e/v6e).
        if tc == num_channels and num_channels > 1:
            tc = max(d for d in _divisors(num_channels) if d <= num_channels // 2)
    else:
        tc = 1
        # BlockSpec sublane rule: a partial segment block must be a multiple of 8
        # (or equal the full extent).
        cands = [d for d in _divisors(num_segments)
                 if (d % 8 == 0 or d == num_segments)
                 and d * seg_bytes <= target_block_bytes]
        if cands:
            ts = max(cands)
        else:
            c8 = [d for d in _divisors(num_segments) if d % 8 == 0]
            ts = min(c8) if c8 else num_segments
    return tc, ts


def positional_embedding(relative_embedding, channel_embedding):
    """relative_embedding: (num_segments, half_dim);
    channel_embedding: (num_channels, hidden_dim - half_dim).
    Returns (num_channels, num_segments, hidden_dim)."""
    num_segments, half_dim = relative_embedding.shape
    num_channels, ch_dim = channel_embedding.shape
    hidden_dim = half_dim + ch_dim
    out_dtype = jnp.result_type(relative_embedding.dtype, channel_embedding.dtype)
    itemsize = jnp.dtype(out_dtype).itemsize

    tc, ts = _select_tiles(num_channels, num_segments, hidden_dim, itemsize)
    grid = (num_channels // tc, num_segments // ts)

    # If the split point is 128-lane aligned, two unmasked slice stores beat the concat.
    aligned_split = (half_dim % 128 == 0) and (ch_dim % 128 == 0)

    def kernel(re_ref, ce_ref, o_ref):
        # re_ref: (S, half_dim) resident; ce_ref: (C, ch_dim) resident;
        # o_ref: (tc, ts, hidden_dim) output block.
        if ts == num_segments:
            re = re_ref[...]
        else:
            s0 = pl.multiple_of(pl.program_id(1) * ts, ts)
            re = re_ref[pl.ds(s0, ts), :]
        if tc == num_channels:
            ce = ce_ref[...]
        else:
            c0 = pl.multiple_of(pl.program_id(0) * tc, tc)
            ce = ce_ref[pl.ds(c0, tc), :]
        re_b = jnp.broadcast_to(re[None, :, :], (tc, ts, half_dim)).astype(o_ref.dtype)
        ce_b = jnp.broadcast_to(ce[:, None, :], (tc, ts, ch_dim)).astype(o_ref.dtype)
        if aligned_split:
            # 128-aligned boundary: two unmasked full-width slice stores.
            o_ref[:, :, :half_dim] = re_b
            o_ref[:, :, half_dim:] = ce_b
        else:
            # Fuse the concat in vregs -> one lane-dense store of the whole block.
            o_ref[...] = jnp.concatenate([re_b, ce_b], axis=-1)

    out_block_bytes = tc * ts * hidden_dim * itemsize
    table_bytes = (relative_embedding.size + channel_embedding.size) * itemsize
    out_bytes = num_channels * num_segments * hidden_dim * itemsize
    # Double-buffered output block + (double-buffered) resident tables + headroom;
    # kept well under v7x's 64 MiB physical VMEM.
    needed = 2 * out_block_bytes + 2 * table_bytes
    vmem_limit = int(min(max(2 * needed + (4 << 20), 16 << 20), 48 << 20))

    # Note: once blocks are large, pipeline_mode=pl.Buffered(3) on out_specs can smooth
    # writeback-DMA jitter on v5e/v6e (skip on v7x if VMEM is tight).
    return pl.pallas_call(
        kernel,
        out_shape=jax.ShapeDtypeStruct(
            (num_channels, num_segments, hidden_dim), out_dtype),
        grid_spec=pltpu.PrefetchScalarGridSpec(
            num_scalar_prefetch=0,
            grid=grid,
            in_specs=[
                # Whole tables resident in VMEM: constant block index -> a single DMA.
                pl.BlockSpec((num_segments, half_dim), lambda ci, si: (0, 0)),
                pl.BlockSpec((num_channels, ch_dim), lambda ci, si: (0, 0)),
            ],
            out_specs=pl.BlockSpec((tc, ts, hidden_dim),
                                   lambda ci, si: (ci, si, 0)),
        ),
        compiler_params=pltpu.CompilerParams(
            dimension_semantics=("parallel", "parallel"),
            vmem_limit_bytes=vmem_limit),
        cost_estimate=pl.CostEstimate(
            flops=0, transcendentals=0, bytes_accessed=table_bytes + out_bytes),
    )(relative_embedding, channel_embedding)


if __name__ == "__main__":
    # Small shapes consistent with the module.
    num_segments = 8
    num_channels = 4
    hidden_dim = 32
    half_dim = hidden_dim // 2

    key = jax.random.PRNGKey(0)
    kr, kc = jax.random.split(key)
    relative_embedding = jax.random.normal(
        kr, (num_segments, half_dim), jnp.float32)
    channel_embedding = jax.random.normal(
        kc, (num_channels, hidden_dim - half_dim), jnp.float32)

    out = jax.block_until_ready(
        positional_embedding(relative_embedding, channel_embedding))

    # Pure-JAX reference (mirrors torch.tile + torch.cat).
    re = jnp.tile(relative_embedding[None, :, :], (num_channels, 1, 1))
    ce = jnp.tile(channel_embedding[:, None, :], (1, num_segments, 1))
    ref = jnp.concatenate([re, ce], axis=-1)

    assert out.shape == (num_channels, num_segments, hidden_dim), out.shape
    assert jnp.allclose(out, ref, atol=1e-6, rtol=1e-6), float(
        jnp.max(jnp.abs(out - ref)))

    print("KERNEL_OK")
</pallas_src>

<mosaic_0001>
module attributes {stable_mosaic.version = 11 : i64} {
  func.func @kernel(%arg0: i32, %arg1: i32, %arg2: memref<8x16xf32, #tpu.memory_space<vmem>>, %arg3: memref<4x16xf32, #tpu.memory_space<vmem>>, %arg4: memref<2x8x32xf32, #tpu.memory_space<vmem>>) attributes {dimension_semantics = [#tpu.dimension_semantics<parallel>, #tpu.dimension_semantics<parallel>], iteration_bounds = array<i64: 2, 1>, scalar_prefetch = 0 : i64, scratch_operands = 0 : i64, tpu.core_type = #tpu.core_type<tc>, window_params = [{pipeline_mode = #tpu.pipeline_mode<synchronous>, transform_indices = @transform_0, window_bounds = array<i64: 8, 16>}, {pipeline_mode = #tpu.pipeline_mode<synchronous>, transform_indices = @transform_1, window_bounds = array<i64: 4, 16>}, {transform_indices = @transform_2, window_bounds = array<i64: 2, 8, 32>}]} {
    %c0 = arith.constant 0 : index
    %c0_0 = arith.constant 0 : index
    %0 = vector.load %arg2[%c0, %c0_0] : memref<8x16xf32, #tpu.memory_space<vmem>>, vector<8x16xf32>
    %c2_i32 = arith.constant 2 : i32
    %1 = arith.muli %arg0, %c2_i32 : i32
    %2 = tpu.assume_multiple %1, 2 : i32
    %3 = arith.index_cast %2 : i32 to index
    %c0_1 = arith.constant 0 : index
    %4 = vector.load %arg3[%3, %c0_1] : memref<4x16xf32, #tpu.memory_space<vmem>>, vector<2x16xf32>
    %5 = vector.shape_cast %0 : vector<8x16xf32> to vector<1x8x16xf32>
    %6 = vector.shape_cast %5 : vector<1x8x16xf32> to vector<1x8x16xf32>
    %7 = vector.broadcast %6 : vector<1x8x16xf32> to vector<2x8x16xf32>
    %8 = vector.shape_cast %4 : vector<2x16xf32> to vector<2x1x16xf32>
    %9 = vector.shape_cast %8 : vector<2x1x16xf32> to vector<2x1x16xf32>
    %10 = vector.broadcast %9 : vector<2x1x16xf32> to vector<2x8x16xf32>
    %11 = tpu.concatenate %7, %10 in 2 : vector<2x8x16xf32>, vector<2x8x16xf32> -> vector<2x8x32xf32>
    %c0_2 = arith.constant 0 : index
    %c0_3 = arith.constant 0 : index
    %c0_4 = arith.constant 0 : index
    %12 = vector.load %arg4[%c0_2, %c0_3, %c0_4] : memref<2x8x32xf32, #tpu.memory_space<vmem>>, vector<2x8x32xf32>
    tpu.vector_store %arg4[%c0_2, %c0_3, %c0_4], %11 {strides = array<i32>} : memref<2x8x32xf32, #tpu.memory_space<vmem>>, vector<2x8x32xf32>,
    return
  }
  func.func @transform_0(%arg0: i32, %arg1: i32) -> (i32, i32) {
    %c0_i32 = arith.constant 0 : i32
    %c0_i32_0 = arith.constant 0 : i32
    %c0_i32_1 = arith.constant 0 : i32
    return %c0_i32, %c0_i32_0 : i32, i32
  }
  func.func @transform_1(%arg0: i32, %arg1: i32) -> (i32, i32) {
    %c0_i32 = arith.constant 0 : i32
    %c0_i32_0 = arith.constant 0 : i32
    %c0_i32_1 = arith.constant 0 : i32
    return %c0_i32, %c0_i32_0 : i32, i32
  }
  func.func @transform_2(%arg0: i32, %arg1: i32) -> (i32, i32, i32) {
    %c0_i32 = arith.constant 0 : i32
    %c0_i32_0 = arith.constant 0 : i32
    return %arg0, %arg1, %c0_i32 : i32, i32, i32
  }
}

</mosaic_0001>

<llo_original>
// kernel: tpu_custom_call.1
$region0: #{tpu_custom_call.1}
  #allocation0 [shape = 'u32[]', space=smem, size = 0x4, offset = 0x4, fixed_abs, tag = 'smem constant byte address 0x4 - core index']
  #allocation1 [shape = 'u32[144,128]{1,0:T(1,128)}', space=vmem, size = 0x12000, scoped, tag = 'internal scratch']
  %s0 = inlined_call_operand.hbm [shape: f32[8,16], index: 0, kind: input, shape index: {}]
  %s1 = inlined_call_operand.hbm [shape: f32[4,16], index: 1, kind: input, shape index: {}]
  %s2 = inlined_call_operand.hbm [shape: f32[4,8,32], index: 2, kind: output, shape index: {}]
  %s3 = sld [smem:[#allocation0]]
  $region49: #{tpu_custom_call.1} parent=0
    _
  %s5 = ssub.s32 1, %s3
  %s6 = scalar_select 0, %s5, %s3
  $region1: #{tpu_custom_call.1} parent=0
    #allocation2 [shape = 'u8[4096]{0}', space=vmem, size = 0x1000, scoped, tag = 'input window, operand 0, single buffered']
    #allocation3 [shape = 's32[2]{0}', space=sflag, size = 0x8, scoped, tag = 'scoped memory for tpu_custom_call.1']
    #allocation4 [shape = 's32[2]{0}', space=sflag, size = 0x8, scoped, tag = 'scoped memory for tpu_custom_call.1']
    #allocation5 [shape = 'u8[2048]{0}', space=vmem, size = 0x800, scoped, tag = 'input window, operand 1, single buffered']
    #allocation6 [shape = 's32[1]{0}', space=sflag, size = 0x4, scoped, tag = 'scoped memory for tpu_custom_call.1']
    #allocation7 [shape = 'u8[16384]{0}', space=vmem, size = 0x4000, scoped, tag = 'output window, operand 0']
    %7 = vsyncpa [#allocation3], 0
    %8 = vsyncpa [#allocation6], 0
    %9 = vsyncpa [#allocation4], 0
    %s10 = scalar_lea.sflag [#allocation4], 1
    %11 = vsyncpa %s10, 0
    loop: start=0, step=1, limit=4
    $region2: #{tpu_custom_call.1} parent=1 // loop_pre_header
      _
    $region3: #{tpu_custom_call.1} parent=1 // loop_header
      %s13 = sphi 0, %s17
      %p14 = scmp.ge.s32.totalorder %s13, 4
      %s20 = sphi 0, %s32
      %s21 = sphi 0, %s28
      %s22 = sphi 0, %s20
      %s23 = sphi 0, %s21
      %s24 = sphi 0, %s22
      %s25 = sphi 0, %s23
      %s33 = sphi 0, %s33
      %s35 = sphi 0, %s33
      %s36 = sphi 0, %s35
      %s50 = sphi 0, %s36
      %s54 = sphi 0, %s54
      %s56 = sphi 0, %s54
      %s57 = sphi 0, %s56
      %s71 = sphi 0, %s57
      %s79 = sphi 0, %s81
      %s82 = sphi 0, %s79
      %s83 = sphi 0, %s82
      %s99 = sphi 0, %s83
    $region4: #{tpu_custom_call.1} parent=1 // loop_header_branch
      %16 = sbr.rel (%p14) target = $region8
    $region5: #{tpu_custom_call.1} parent=1 // loop_body
      %s18 = ssub.s32 %s13, 1
      %s19 = ssub.s32 %s13, 2
      %s26 = sadd.s32 1, %s21
      %p27 = scmp.ge.s32.totalorder %s26, 1
      %s28 = scalar_select %p27, 0, %s26
      %s29 = sadd.s32 1, %s20
      %s30 = scalar_select %p27, %s29, %s20
      %p31 = scmp.ge.s32.totalorder %s30, 2
      %s32 = scalar_select %p31, 0, %s30
      %s34 = sadd.s32 %s33, 1
      %p37 = scmp.eq.s32.totalorder %s13, 1
      %p38 = scmp.ne.s32.totalorder %s33, %s35
      %p39 = scmp.eq.s32.totalorder %s13, 0
      %p40 = por %p38, %p39
      %p41 = scmp.ne.s32.totalorder %s33, %s35
      %p42 = scmp.eq.s32.totalorder %s18, 1
      %p43 = por %p41, %p42
      %p44 = scmp.ne.s32.totalorder %s35, %s36
      %p45 = scmp.eq.s32.totalorder %s18, 0
      %p46 = por %p44, %p45
      %p47 = scmp.ne.s32.totalorder %s35, %s36
      %p48 = scmp.eq.s32.totalorder %s19, 1
      %p49 = por %p47, %p48
      %p51 = scmp.ne.s32.totalorder %s36, %s50
      %p52 = scmp.eq.s32.totalorder %s19, 0
      %p53 = por %p51, %p52
      %s55 = sadd.s32 %s54, 1
      %p58 = scmp.eq.s32.totalorder %s13, 1
      %p59 = scmp.ne.s32.totalorder %s54, %s56
      %p60 = scmp.eq.s32.totalorder %s13, 0
      %p61 = por %p59, %p60
      %p62 = scmp.ne.s32.totalorder %s54, %s56
      %p63 = scmp.eq.s32.totalorder %s18, 1
      %p64 = por %p62, %p63
      %p65 = scmp.ne.s32.totalorder %s56, %s57
      %p66 = scmp.eq.s32.totalorder %s18, 0
      %p67 = por %p65, %p66
      %p68 = scmp.ne.s32.totalorder %s56, %s57
      %p69 = scmp.eq.s32.totalorder %s19, 1
      %p70 = por %p68, %p69
      %p72 = scmp.ne.s32.totalorder %s57, %s71
      %p73 = scmp.eq.s32.totalorder %s19, 0
      %p74 = por %p72, %p73
      %s75 = ssub.s32 %s20, %s32
      %s76 = ssub.s32 %s21, %s28
      %s77 = sor.u32 %s75, %s76
      %p78 = scmp.eq.s32.totalorder %s77, 0
      %s80 = sadd.s32 %s79, 1
      %s81 = scalar_select %p78, %s79, %s80
      %p84 = pneg %p78
      %p85 = scmp.eq.s32.totalorder %s13, 1
      %p86 = por %p84, %p85
      %p87 = scmp.ne.s32.totalorder %s79, %s82
      %p88 = scmp.eq.s32.totalorder %s13, 0
      %p89 = por %p87, %p88
      %p90 = scmp.ne.s32.totalorder %s79, %s82
      %p91 = scmp.eq.s32.totalorder %s18, 1
      %p92 = por %p90, %p91
      %p93 = scmp.ne.s32.totalorder %s82, %s83
      %p94 = scmp.eq.s32.totalorder %s18, 0
      %p95 = por %p93, %p94
      %p96 = scmp.ne.s32.totalorder %s82, %s83
      %p97 = scmp.eq.s32.totalorder %s19, 1
      %p98 = por %p96, %p97
      %p100 = scmp.ne.s32.totalorder %s83, %s99
      %p101 = scmp.eq.s32.totalorder %s19, 0
      %p102 = por %p100, %p101
      %p103 = scmp.le.s32.totalorder 1, %s13
      %p104 = scmp.lt.s32.totalorder %s13, 3
      %p105 = pnand %p103, %p104
      %p106 = pneg %p105
      // Predicated region
      $region9: #{tpu_custom_call.1} parent=5 // pred_check
        _
      $region10: #{tpu_custom_call.1} parent=5 // pred_check_branch
        %108 = sbr.rel (%p105) target = $region12
      $region11: #{tpu_custom_call.1} parent=5 // pred_region
        %s109 = ssub.s32 %s13, 1
        // Predicated region
        $region13: #{tpu_custom_call.1} parent=11 // pred_check
          %p110 = pneg %p46
        $region14: #{tpu_custom_call.1} parent=11 // pred_check_branch
          %112 = sbr.rel (%p110) target = $region16
        $region15: #{tpu_custom_call.1} parent=11 // pred_region
          %s114 = ssub.s32 128, 128
          %115 = vsyncadd [#allocation3], %s114
          %s117 = sshll.u32 [#allocation2], 4
          %s118 = int_to_ptr.vmem [resolvable:$true] %s117
          %120 = dma.hbm_to_vmem [thread:$0]  %s0, 128, %s118, [#allocation3]
        $region16: #{tpu_custom_call.1} parent=11 // pred_fallthru
          _
        // Predicated region
        $region17: #{tpu_custom_call.1} parent=11 // pred_check
          %p121 = pneg %p67
        $region18: #{tpu_custom_call.1} parent=11 // pred_check_branch
          %123 = sbr.rel (%p121) target = $region20
        $region19: #{tpu_custom_call.1} parent=11 // pred_region
          %s125 = ssub.s32 64, 64
          %126 = vsyncadd [#allocation6], %s125
          %s128 = sshll.u32 [#allocation5], 4
          %s129 = int_to_ptr.vmem [resolvable:$true] %s128
          %131 = dma.hbm_to_vmem [thread:$0]  %s1, 64, %s129, [#allocation6]
        $region20: #{tpu_custom_call.1} parent=11 // pred_fallthru
          _
      $region12: #{tpu_custom_call.1} parent=5 // pred_fallthru
        _
      %p132 = scmp.lt.s32.totalorder %s13, 2
      // Predicated region
      $region21: #{tpu_custom_call.1} parent=5 // pred_check
        %p133 = pneg %p132
      $region22: #{tpu_custom_call.1} parent=5 // pred_check_branch
        %135 = sbr.rel (%p133) target = $region24
      $region23: #{tpu_custom_call.1} parent=5 // pred_region
        _
      $region24: #{tpu_custom_call.1} parent=5 // pred_fallthru
        _
      %p136 = scmp.le.s32.totalorder 1, %s13
      %p137 = scmp.lt.s32.totalorder %s13, 3
      %p138 = pnand %p136, %p137
      %p139 = pneg %p138
      // Predicated region
      $region25: #{tpu_custom_call.1} parent=5 // pred_check
        _
      $region26: #{tpu_custom_call.1} parent=5 // pred_check_branch
        %141 = sbr.rel (%p138) target = $region28
      $region27: #{tpu_custom_call.1} parent=5 // pred_region
        %s142 = ssub.s32 %s13, 1
        // Predicated region
        $region29: #{tpu_custom_call.1} parent=27 // pred_check
          %p143 = pneg %p46
        $region30: #{tpu_custom_call.1} parent=27 // pred_check_branch
          %145 = sbr.rel (%p143) target = $region32
        $region31: #{tpu_custom_call.1} parent=27 // pred_region
          %146 = dma.done [#allocation3], 128
        $region32: #{tpu_custom_call.1} parent=27 // pred_fallthru
          _
        // Predicated region
        $region33: #{tpu_custom_call.1} parent=27 // pred_check
          %p147 = pneg %p67
        $region34: #{tpu_custom_call.1} parent=27 // pred_check_branch
          %149 = sbr.rel (%p147) target = $region36
        $region35: #{tpu_custom_call.1} parent=27 // pred_region
          %150 = dma.done [#allocation6], 64
        $region36: #{tpu_custom_call.1} parent=27 // pred_fallthru
          _
        %p151 = pneg %p46
        %p152 = pneg %p43
        %p153 = pneg %p67
        %p154 = pneg %p64
        %p155 = pneg %p95
        %p156 = pneg %p92
        %s157 = sand.u32 %s82, 1
        %s158 = scalar_lea.sflag [#allocation4], %s157
        %s159 = sand.u32 %s82, 1
        %s160 = smul.addr %s159, 16
        %s161 = scalar_lea.vmem [#allocation7], %s160
        %s162 = smul.u32 2, %s22
        %v163 = vld [vmem:[#allocation2] sm:$0xff]
        %s164 = smul.u32 %s22, 2
        %s165 = scalar_lea.vmem [#allocation5], %s164
        %v166 = vld [vmem:[%s165] sm:$0x3]
        %v169 = vunpack.c.l.s4 1966171168
        %v170 = vunpack.c.0.s8 %v169
        %v171 = vlaneseq
        %v172 = vshrl.u32 %v171, 7
        %v173 = vsub.s32 %v170, %v172
        %v174 = vrot.slane %v166, %v173
        %v175 = vcombine.high %v174, %v174
        %v177 = vunpack.c.l.s4 1966171168
        %v178 = vunpack.c.0.s8 %v177
        %v179 = vlaneseq
        %v180 = vshrl.u32 %v179, 7
        %v181 = vsub.s32 %v178, %v180
        %v182 = vrot.slane %v174, %v181
        %v184 = vunpack.c.l.s4 1966171168
        %v185 = vunpack.c.0.s8 %v184
        %v186 = vlaneseq
        %v187 = vshrl.u32 %v186, 7
        %v188 = vsub.s32 %v185, %v187
        %v189 = vrot.slane %v175, %v188
        %v190 = vlaneseq
        %v191 = vshrl.u32 %v190, 7
        %v192 = vsub.s32 0, %v191
        %v193 = vrot.slane %v182, %v192
        %v194 = vlaneseq
        %v195 = vshrl.u32 %v194, 7
        %v196 = vsub.s32 0, %v195
        %v197 = vrot.slane %v189, %v196
        %198 = vrot.lane.b32.xlu0 %v193, 16
        %v199 = vpop.permute.xlu0 %198
        %200 = vrot.lane.b32.xlu0 %v197, 16
        %v201 = vpop.permute.xlu0 %200
        %vm204 = vcmask 130048
        %v205 = vsel %vm204, %v163, %v199
        %v206 = vsel %vm204, %v163, %v201
        %vm207 = vcmask 261120
        %208 = vst.msk [vmem:[%s161] sm:$0xff] %vm207, %v205
        %209 = vst.msk [vmem:[%s161 + $0x8] sm:$0xff] %vm207, %v206
        %s210 = sand.u32 %s82, 1
        %s211 = scalar_lea.sflag [#allocation4], %s210
        %s212 = sand.u32 %s82, 1
        %s213 = smul.addr %s212, 16
        %s214 = scalar_lea.vmem [#allocation7], %s213
        // Predicated region
        $region37: #{tpu_custom_call.1} parent=27 // pred_check
          %p215 = pneg %p92
        $region38: #{tpu_custom_call.1} parent=27 // pred_check_branch
          %217 = sbr.rel (%p215) target = $region40
        $region39: #{tpu_custom_call.1} parent=27 // pred_region
          %s218 = smul.u32 2, %s22
          %s220 = ssub.s32 256, 256
          %221 = vsyncadd %s211, %s220
          %s222 = sadd.s32 %s23, %s218
          %s223 = smul.addr %s222, 128
          %s224 = scalar_lea.hbm %s2, %s223
          %s225 = sshll.u32 %s214, 4
          %s226 = int_to_ptr.vmem [resolvable:$true] %s225
          %231 = dma.vmem_to_hbm [thread:$0]  %s226, 256, %s224, %s211, 128, 128, 8
        $region40: #{tpu_custom_call.1} parent=27 // pred_fallthru
          _
      $region28: #{tpu_custom_call.1} parent=5 // pred_fallthru
        _
      %p232 = scmp.le.s32.totalorder 2, %s13
      // Predicated region
      $region41: #{tpu_custom_call.1} parent=5 // pred_check
        %p233 = pneg %p232
      $region42: #{tpu_custom_call.1} parent=5 // pred_check_branch
        %235 = sbr.rel (%p233) target = $region44
      $region43: #{tpu_custom_call.1} parent=5 // pred_region
        %s236 = ssub.s32 %s13, 2
        // Predicated region
        $region45: #{tpu_custom_call.1} parent=43 // pred_check
          %p237 = pneg %p98
        $region46: #{tpu_custom_call.1} parent=43 // pred_check_branch
          %239 = sbr.rel (%p237) target = $region48
        $region47: #{tpu_custom_call.1} parent=43 // pred_region
          %s240 = sand.u32 %s83, 1
          %s241 = scalar_lea.sflag [#allocation4], %s240
          %s242 = sand.u32 %s83, 1
          %s243 = smul.addr %s242, 16
          %s244 = scalar_lea.vmem [#allocation7], %s243
          %245 = dma.done %s241, 256
        $region48: #{tpu_custom_call.1} parent=43 // pred_fallthru
          _
      $region44: #{tpu_custom_call.1} parent=5 // pred_fallthru
        _
    $region6: #{tpu_custom_call.1} parent=1 // loop_footer
      %s17 = sadd.s32 1, %s13
    $region7: #{tpu_custom_call.1} parent=1 // loop_footer_branch
      %12 = sbr.rel target = $region3
    $region8: #{tpu_custom_call.1} parent=1 // loop_exit
      _
    %246 = vsyncpa [#allocation3], 1
    %s247 = scalar_lea.sflag [#allocation3], 1
    %248 = vsyncpa %s247, 1
    %249 = vsyncpa [#allocation6], 1
    %250 = vsyncpa [#allocation4], 1
    %s251 = scalar_lea.sflag [#allocation4], 1
    %252 = vsyncpa %s251, 1

</llo_original>
